<compile_context>
chip_gen: v7x
topology: tpu7x:2x2x1
jax: 0.10.0
libtpu: 0.0.40
codegen_flags: <defaults>
</compile_context>

<pallas_src>
import functools
import math

import jax
import jax.numpy as jnp
import numpy as np
from jax.experimental import pallas as pl
from jax.experimental.pallas import tpu as pltpu

NEG_SLOPE = 0.01  # PyTorch LeakyReLU default negative_slope
TAPS = tuple((dh, dw) for dh in range(3) for dw in range(3))  # fixed 3x3 tap order
CENTER_TAP = 4  # (dh, dw) == (1, 1): offset (0, 0), mask is all ones


def _resblk_kernel(H, W, x_ref, mask_ref, a1_ref, b1_ref, a2_ref, b2_ref, o_ref):
    # x_ref   : (1, Cin, P)       one image, P = H*W on the lane axis
    # mask_ref: (9, P)            0/1 border-validity mask per 3x3 tap (f32)
    # a1_ref  : (Cmid, 9*Cin)     im2col weights of conv1 (tap-major columns)
    # b1_ref  : (Cmid, 1)         conv1 bias
    # a2_ref  : (Cin, 9*Cmid)     im2col weights of conv2
    # b2_ref  : (Cin, 1)          conv2 bias
    # o_ref   : (1, Cin, P)
    P = H * W
    x = x_ref[0]                  # (Cin, P), f32
    m = mask_ref[...]             # (9, P),  f32, loaded once, reused by both convs

    def conv3x3(inp, a_ref, b_ref):
        # im2col: each 3x3 tap is a lane-axis roll of the flattened plane; the
        # out-of-image source pixels are zeroed by the mask (this *is* the
        # zero padding — no padded scratch buffer, no store of the taps).
        taps = []
        for t, (dh, dw) in enumerate(TAPS):
            shift = -((dh - 1) * W + (dw - 1))                 # tap[p] = inp[p - shift]
            rolled = inp if shift == 0 else pltpu.roll(inp, shift % P, 1)
            if t == CENTER_TAP:
                taps.append(rolled)                            # mask is all ones: skip mul
            else:
                taps.append(rolled * m[t:t + 1, :])            # (1,P) lane-broadcast mask
        cols = jnp.concatenate(taps, axis=0)                   # (9*rows_in, P)
        acc = jnp.dot(a_ref[...], cols,                        # single MXU matmul
                      preferred_element_type=jnp.float32)      # (rows_out, P) f32
        return acc + b_ref[...]                                # lane-broadcast bias

    y = conv3x3(x, a1_ref, b1_ref)
    y = jnp.maximum(y, NEG_SLOPE * y)                          # LeakyReLU (mul + max)
    y = conv3x3(y, a2_ref, b2_ref)
    o_ref[0] = (y + x).astype(o_ref.dtype)                     # residual add, full vst


def _tap_masks_np(H, W):
    """(9, H*W) float 0/1 masks: validity of each 3x3 tap's source pixel.

    Built in numpy: under jit these are trace-time constants (no per-call ops)."""
    P = H * W
    hh, ww = np.meshgrid(np.arange(H), np.arange(W), indexing="ij")
    hh = hh.reshape(-1)
    ww = ww.reshape(-1)
    masks = np.zeros((9, P), np.float32)
    for t, (dh, dw) in enumerate(TAPS):
        oh, ow = dh - 1, dw - 1
        valid = (hh + oh >= 0) & (hh + oh < H) & (ww + ow >= 0) & (ww + ow < W)
        masks[t] = valid.astype(np.float32)
    return masks


def _pack_weights(w):
    """(Cout, Cin, 3, 3) OIHW conv weight -> (Cout, 9*Cin) im2col matrix.

    Column order is tap-major then channel, matching the cols concat in-kernel."""
    return jnp.concatenate([w[:, :, dh, dw] for (dh, dw) in TAPS], axis=1).astype(jnp.float32)


@jax.jit
def resblk_forward(x_nchw, w1, b1, w2, b2):
    """x_nchw: (N, Cin, H, W); w1: (Cmid, Cin, 3, 3); w2: (Cin, Cmid, 3, 3); b*: (C*,)."""
    N, Cin, H, W = x_nchw.shape
    Cmid = w1.shape[0]
    P = H * W

    # Free reshape (no transpose, no pad): row = n*Cin + c, lane axis = flattened H*W.
    x3d = x_nchw.reshape(N, Cin, P)
    masks = jnp.asarray(_tap_masks_np(H, W))                   # (9, P) constant under jit
    a1 = _pack_weights(w1)                                     # (Cmid, 9*Cin)
    a2 = _pack_weights(w2)                                     # (Cin, 9*Cmid)
    b1c = b1.astype(jnp.float32).reshape(Cmid, 1)
    b2c = b2.astype(jnp.float32).reshape(Cin, 1)

    out3d = pl.pallas_call(
        functools.partial(_resblk_kernel, H, W),
        out_shape=jax.ShapeDtypeStruct((N, Cin, P), x_nchw.dtype),
        grid_spec=pltpu.PrefetchScalarGridSpec(
            num_scalar_prefetch=0,
            grid=(N,),                                          # one image per grid step
            in_specs=[
                pl.BlockSpec((1, Cin, P), lambda n: (n, 0, 0)),           # per-image x
                pl.BlockSpec((9, P), lambda n: (0, 0)),                   # masks (shared)
                pl.BlockSpec((Cmid, 9 * Cin), lambda n: (0, 0)),          # conv1 weights
                pl.BlockSpec((Cmid, 1), lambda n: (0, 0)),                # conv1 bias
                pl.BlockSpec((Cin, 9 * Cmid), lambda n: (0, 0)),          # conv2 weights
                pl.BlockSpec((Cin, 1), lambda n: (0, 0)),                 # conv2 bias
            ],
            out_specs=pl.BlockSpec((1, Cin, P), lambda n: (n, 0, 0)),
        ),
        # Batch axis is independent -> "parallel": v7x megacore shards images
        # across its two TensorCores; v5e/v6e just pipeline the steps.
        compiler_params=pltpu.CompilerParams(dimension_semantics=("parallel",)),
    )(x3d, masks, a1, b1c, a2, b2c)

    return out3d.reshape(N, Cin, H, W)                          # free reshape back to NCHW


def reference_forward(x, w1, b1, w2, b2):
    """Pure-JAX reference (lax conv) for correctness checking."""
    dn = ('NCHW', 'OIHW', 'NCHW')
    y = jax.lax.conv_general_dilated(x, w1, (1, 1), ((1, 1), (1, 1)),
                                     dimension_numbers=dn) + b1[None, :, None, None]
    y = jnp.where(y >= 0, y, NEG_SLOPE * y)
    y = jax.lax.conv_general_dilated(y, w2, (1, 1), ((1, 1), (1, 1)),
                                     dimension_numbers=dn) + b2[None, :, None, None]
    return x + y


if __name__ == "__main__":
    # Small shapes consistent with the module: batch=2, in=out channels=4, 16x16 spatial.
    N, C, H, W = 2, 4, 16, 16
    key = jax.random.PRNGKey(0)
    kx, kw1, kw2, kb1, kb2 = jax.random.split(key, 5)

    std = math.sqrt(2.0 / (3 * 3 * C))
    x = jax.random.normal(kx, (N, C, H, W), dtype=jnp.float32)
    w1 = std * jax.random.normal(kw1, (C, C, 3, 3), dtype=jnp.float32)
    w2 = std * jax.random.normal(kw2, (C, C, 3, 3), dtype=jnp.float32)
    b1 = 0.1 * jax.random.normal(kb1, (C,), dtype=jnp.float32)
    b2 = 0.1 * jax.random.normal(kb2, (C,), dtype=jnp.float32)

    out = resblk_forward(x, w1, b1, w2, b2)
    out = jax.block_until_ready(out)

    ref = reference_forward(x, w1, b1, w2, b2)
    np.testing.assert_allclose(np.asarray(out), np.asarray(ref), rtol=1e-4, atol=1e-4)

    print("KERNEL_OK")
</pallas_src>

<mosaic_0001>
module attributes {stable_mosaic.version = 11 : i64} {
  func.func @_resblk_kernel(%arg0: i32, %arg1: memref<1x4x256xf32, #tpu.memory_space<vmem>>, %arg2: memref<9x256xf32, #tpu.memory_space<vmem>>, %arg3: memref<4x36xf32, #tpu.memory_space<vmem>>, %arg4: memref<4x1xf32, #tpu.memory_space<vmem>>, %arg5: memref<4x36xf32, #tpu.memory_space<vmem>>, %arg6: memref<4x1xf32, #tpu.memory_space<vmem>>, %arg7: memref<1x4x256xf32, #tpu.memory_space<vmem>>) attributes {dimension_semantics = [#tpu.dimension_semantics<parallel>], iteration_bounds = array<i64: 2>, scalar_prefetch = 0 : i64, scratch_operands = 0 : i64, tpu.core_type = #tpu.core_type<tc>, window_params = [{transform_indices = @transform_0, window_bounds = array<i64: 1, 4, 256>}, {pipeline_mode = #tpu.pipeline_mode<synchronous>, transform_indices = @transform_1, window_bounds = array<i64: 9, 256>}, {pipeline_mode = #tpu.pipeline_mode<synchronous>, transform_indices = @transform_2, window_bounds = array<i64: 4, 36>}, {pipeline_mode = #tpu.pipeline_mode<synchronous>, transform_indices = @transform_3, window_bounds = array<i64: 4, 1>}, {pipeline_mode = #tpu.pipeline_mode<synchronous>, transform_indices = @transform_4, window_bounds = array<i64: 4, 36>}, {pipeline_mode = #tpu.pipeline_mode<synchronous>, transform_indices = @transform_5, window_bounds = array<i64: 4, 1>}, {transform_indices = @transform_6, window_bounds = array<i64: 1, 4, 256>}]} {
    %c0 = arith.constant 0 : index
    %c0_0 = arith.constant 0 : index
    %c0_1 = arith.constant 0 : index
    %0 = vector.load %arg1[%c0, %c0_0, %c0_1] : memref<1x4x256xf32, #tpu.memory_space<vmem>>, vector<1x4x256xf32>
    %1 = vector.shape_cast %0 : vector<1x4x256xf32> to vector<4x256xf32>
    %c0_2 = arith.constant 0 : index
    %c0_3 = arith.constant 0 : index
    %2 = vector.load %arg2[%c0_2, %c0_3] : memref<9x256xf32, #tpu.memory_space<vmem>>, vector<9x256xf32>
    %c17_i32 = arith.constant 17 : i32
    %3 = tpu.dynamic_rotate %1 by %c17_i32 dim 1 : vector<4x256xf32>, i32 -> vector<4x256xf32>
    %4 = vector.extract_strided_slice %2 {offsets = [0, 0], sizes = [1, 256], strides = [1, 1]} : vector<9x256xf32> to vector<1x256xf32>
    %5 = vector.broadcast %4 : vector<1x256xf32> to vector<4x256xf32>
    %6 = arith.mulf %3, %5 : vector<4x256xf32>
    %c16_i32 = arith.constant 16 : i32
    %7 = tpu.dynamic_rotate %1 by %c16_i32 dim 1 : vector<4x256xf32>, i32 -> vector<4x256xf32>
    %8 = vector.extract_strided_slice %2 {offsets = [1, 0], sizes = [1, 256], strides = [1, 1]} : vector<9x256xf32> to vector<1x256xf32>
    %9 = vector.broadcast %8 : vector<1x256xf32> to vector<4x256xf32>
    %10 = arith.mulf %7, %9 : vector<4x256xf32>
    %c15_i32 = arith.constant 15 : i32
    %11 = tpu.dynamic_rotate %1 by %c15_i32 dim 1 : vector<4x256xf32>, i32 -> vector<4x256xf32>
    %12 = vector.extract_strided_slice %2 {offsets = [2, 0], sizes = [1, 256], strides = [1, 1]} : vector<9x256xf32> to vector<1x256xf32>
    %13 = vector.broadcast %12 : vector<1x256xf32> to vector<4x256xf32>
    %14 = arith.mulf %11, %13 : vector<4x256xf32>
    %c1_i32 = arith.constant 1 : i32
    %15 = tpu.dynamic_rotate %1 by %c1_i32 dim 1 : vector<4x256xf32>, i32 -> vector<4x256xf32>
    %16 = vector.extract_strided_slice %2 {offsets = [3, 0], sizes = [1, 256], strides = [1, 1]} : vector<9x256xf32> to vector<1x256xf32>
    %17 = vector.broadcast %16 : vector<1x256xf32> to vector<4x256xf32>
    %18 = arith.mulf %15, %17 : vector<4x256xf32>
    %c255_i32 = arith.constant 255 : i32
    %19 = tpu.dynamic_rotate %1 by %c255_i32 dim 1 : vector<4x256xf32>, i32 -> vector<4x256xf32>
    %20 = vector.extract_strided_slice %2 {offsets = [5, 0], sizes = [1, 256], strides = [1, 1]} : vector<9x256xf32> to vector<1x256xf32>
    %21 = vector.broadcast %20 : vector<1x256xf32> to vector<4x256xf32>
    %22 = arith.mulf %19, %21 : vector<4x256xf32>
    %c241_i32 = arith.constant 241 : i32
    %23 = tpu.dynamic_rotate %1 by %c241_i32 dim 1 : vector<4x256xf32>, i32 -> vector<4x256xf32>
    %24 = vector.extract_strided_slice %2 {offsets = [6, 0], sizes = [1, 256], strides = [1, 1]} : vector<9x256xf32> to vector<1x256xf32>
    %25 = vector.broadcast %24 : vector<1x256xf32> to vector<4x256xf32>
    %26 = arith.mulf %23, %25 : vector<4x256xf32>
    %c240_i32 = arith.constant 240 : i32
    %27 = tpu.dynamic_rotate %1 by %c240_i32 dim 1 : vector<4x256xf32>, i32 -> vector<4x256xf32>
    %28 = vector.extract_strided_slice %2 {offsets = [7, 0], sizes = [1, 256], strides = [1, 1]} : vector<9x256xf32> to vector<1x256xf32>
    %29 = vector.broadcast %28 : vector<1x256xf32> to vector<4x256xf32>
    %30 = arith.mulf %27, %29 : vector<4x256xf32>
    %c239_i32 = arith.constant 239 : i32
    %31 = tpu.dynamic_rotate %1 by %c239_i32 dim 1 : vector<4x256xf32>, i32 -> vector<4x256xf32>
    %32 = vector.extract_strided_slice %2 {offsets = [8, 0], sizes = [1, 256], strides = [1, 1]} : vector<9x256xf32> to vector<1x256xf32>
    %33 = vector.broadcast %32 : vector<1x256xf32> to vector<4x256xf32>
    %34 = arith.mulf %31, %33 : vector<4x256xf32>
    %35 = tpu.concatenate %6, %10, %14, %18, %1, %22, %26, %30, %34 in 0 : vector<4x256xf32>, vector<4x256xf32>, vector<4x256xf32>, vector<4x256xf32>, vector<4x256xf32>, vector<4x256xf32>, vector<4x256xf32>, vector<4x256xf32>, vector<4x256xf32> -> vector<36x256xf32>
    %c0_4 = arith.constant 0 : index
    %c0_5 = arith.constant 0 : index
    %36 = vector.load %arg3[%c0_4, %c0_5] : memref<4x36xf32, #tpu.memory_space<vmem>>, vector<4x36xf32>
    %cst = arith.constant dense<0.000000e+00> : vector<4x256xf32>
    %37 = tpu.matmul %36, %35, %cst {dimension_numbers = #tpu.dot_dimension_numbers<[1], [0], [0], [1], [0, 0, 1, 1], [], []>} : vector<4x36xf32>, vector<36x256xf32>, vector<4x256xf32> -> vector<4x256xf32>
    %c0_6 = arith.constant 0 : index
    %c0_7 = arith.constant 0 : index
    %38 = vector.load %arg4[%c0_6, %c0_7] : memref<4x1xf32, #tpu.memory_space<vmem>>, vector<4x1xf32>
    %39 = vector.broadcast %38 : vector<4x1xf32> to vector<4x256xf32>
    %40 = arith.addf %37, %39 : vector<4x256xf32>
    %cst_8 = arith.constant 0.00999999977 : f32
    %41 = vector.broadcast %cst_8 : f32 to vector<4x256xf32>
    %42 = arith.mulf %41, %40 : vector<4x256xf32>
    %43 = arith.maximumf %40, %42 : vector<4x256xf32>
    %c17_i32_9 = arith.constant 17 : i32
    %44 = tpu.dynamic_rotate %43 by %c17_i32_9 dim 1 : vector<4x256xf32>, i32 -> vector<4x256xf32>
    %45 = vector.extract_strided_slice %2 {offsets = [0, 0], sizes = [1, 256], strides = [1, 1]} : vector<9x256xf32> to vector<1x256xf32>
    %46 = vector.broadcast %45 : vector<1x256xf32> to vector<4x256xf32>
    %47 = arith.mulf %44, %46 : vector<4x256xf32>
    %c16_i32_10 = arith.constant 16 : i32
    %48 = tpu.dynamic_rotate %43 by %c16_i32_10 dim 1 : vector<4x256xf32>, i32 -> vector<4x256xf32>
    %49 = vector.extract_strided_slice %2 {offsets = [1, 0], sizes = [1, 256], strides = [1, 1]} : vector<9x256xf32> to vector<1x256xf32>
    %50 = vector.broadcast %49 : vector<1x256xf32> to vector<4x256xf32>
    %51 = arith.mulf %48, %50 : vector<4x256xf32>
    %c15_i32_11 = arith.constant 15 : i32
    %52 = tpu.dynamic_rotate %43 by %c15_i32_11 dim 1 : vector<4x256xf32>, i32 -> vector<4x256xf32>
    %53 = vector.extract_strided_slice %2 {offsets = [2, 0], sizes = [1, 256], strides = [1, 1]} : vector<9x256xf32> to vector<1x256xf32>
    %54 = vector.broadcast %53 : vector<1x256xf32> to vector<4x256xf32>
    %55 = arith.mulf %52, %54 : vector<4x256xf32>
    %c1_i32_12 = arith.constant 1 : i32
    %56 = tpu.dynamic_rotate %43 by %c1_i32_12 dim 1 : vector<4x256xf32>, i32 -> vector<4x256xf32>
    %57 = vector.extract_strided_slice %2 {offsets = [3, 0], sizes = [1, 256], strides = [1, 1]} : vector<9x256xf32> to vector<1x256xf32>
    %58 = vector.broadcast %57 : vector<1x256xf32> to vector<4x256xf32>
    %59 = arith.mulf %56, %58 : vector<4x256xf32>
    %c255_i32_13 = arith.constant 255 : i32
    %60 = tpu.dynamic_rotate %43 by %c255_i32_13 dim 1 : vector<4x256xf32>, i32 -> vector<4x256xf32>
    %61 = vector.extract_strided_slice %2 {offsets = [5, 0], sizes = [1, 256], strides = [1, 1]} : vector<9x256xf32> to vector<1x256xf32>
    %62 = vector.broadcast %61 : vector<1x256xf32> to vector<4x256xf32>
    %63 = arith.mulf %60, %62 : vector<4x256xf32>
    %c241_i32_14 = arith.constant 241 : i32
    %64 = tpu.dynamic_rotate %43 by %c241_i32_14 dim 1 : vector<4x256xf32>, i32 -> vector<4x256xf32>
    %65 = vector.extract_strided_slice %2 {offsets = [6, 0], sizes = [1, 256], strides = [1, 1]} : vector<9x256xf32> to vector<1x256xf32>
    %66 = vector.broadcast %65 : vector<1x256xf32> to vector<4x256xf32>
    %67 = arith.mulf %64, %66 : vector<4x256xf32>
    %c240_i32_15 = arith.constant 240 : i32
    %68 = tpu.dynamic_rotate %43 by %c240_i32_15 dim 1 : vector<4x256xf32>, i32 -> vector<4x256xf32>
    %69 = vector.extract_strided_slice %2 {offsets = [7, 0], sizes = [1, 256], strides = [1, 1]} : vector<9x256xf32> to vector<1x256xf32>
    %70 = vector.broadcast %69 : vector<1x256xf32> to vector<4x256xf32>
    %71 = arith.mulf %68, %70 : vector<4x256xf32>
    %c239_i32_16 = arith.constant 239 : i32
    %72 = tpu.dynamic_rotate %43 by %c239_i32_16 dim 1 : vector<4x256xf32>, i32 -> vector<4x256xf32>
    %73 = vector.extract_strided_slice %2 {offsets = [8, 0], sizes = [1, 256], strides = [1, 1]} : vector<9x256xf32> to vector<1x256xf32>
    %74 = vector.broadcast %73 : vector<1x256xf32> to vector<4x256xf32>
    %75 = arith.mulf %72, %74 : vector<4x256xf32>
    %76 = tpu.concatenate %47, %51, %55, %59, %43, %63, %67, %71, %75 in 0 : vector<4x256xf32>, vector<4x256xf32>, vector<4x256xf32>, vector<4x256xf32>, vector<4x256xf32>, vector<4x256xf32>, vector<4x256xf32>, vector<4x256xf32>, vector<4x256xf32> -> vector<36x256xf32>
    %c0_17 = arith.constant 0 : index
    %c0_18 = arith.constant 0 : index
    %77 = vector.load %arg5[%c0_17, %c0_18] : memref<4x36xf32, #tpu.memory_space<vmem>>, vector<4x36xf32>
    %cst_19 = arith.constant dense<0.000000e+00> : vector<4x256xf32>
    %78 = tpu.matmul %77, %76, %cst_19 {dimension_numbers = #tpu.dot_dimension_numbers<[1], [0], [0], [1], [0, 0, 1, 1], [], []>} : vector<4x36xf32>, vector<36x256xf32>, vector<4x256xf32> -> vector<4x256xf32>
    %c0_20 = arith.constant 0 : index
    %c0_21 = arith.constant 0 : index
    %79 = vector.load %arg6[%c0_20, %c0_21] : memref<4x1xf32, #tpu.memory_space<vmem>>, vector<4x1xf32>
    %80 = vector.broadcast %79 : vector<4x1xf32> to vector<4x256xf32>
    %81 = arith.addf %78, %80 : vector<4x256xf32>
    %82 = arith.addf %81, %1 : vector<4x256xf32>
    %c0_22 = arith.constant 0 : index
    %c0_23 = arith.constant 0 : index
    %c0_24 = arith.constant 0 : index
    %83 = vector.load %arg7[%c0_22, %c0_23, %c0_24] : memref<1x4x256xf32, #tpu.memory_space<vmem>>, vector<1x4x256xf32>
    %84 = vector.shape_cast %83 : vector<1x4x256xf32> to vector<4x256xf32>
    %85 = vector.shape_cast %82 : vector<4x256xf32> to vector<1x4x256xf32>
    tpu.vector_store %arg7[%c0_22, %c0_23, %c0_24], %85 {strides = array<i32>} : memref<1x4x256xf32, #tpu.memory_space<vmem>>, vector<1x4x256xf32>,
    return
  }
  func.func @transform_0(%arg0: i32) -> (i32, i32, i32) {
    %c0_i32 = arith.constant 0 : i32
    %c0_i32_0 = arith.constant 0 : i32
    %c0_i32_1 = arith.constant 0 : i32
    return %arg0, %c0_i32, %c0_i32_0 : i32, i32, i32
  }
  func.func @transform_1(%arg0: i32) -> (i32, i32) {
    %c0_i32 = arith.constant 0 : i32
    %c0_i32_0 = arith.constant 0 : i32
    %c0_i32_1 = arith.constant 0 : i32
    return %c0_i32, %c0_i32_0 : i32, i32
  }
  func.func @transform_2(%arg0: i32) -> (i32, i32) {
    %c0_i32 = arith.constant 0 : i32
    %c0_i32_0 = arith.constant 0 : i32
    %c0_i32_1 = arith.constant 0 : i32
    return %c0_i32, %c0_i32_0 : i32, i32
  }
  func.func @transform_3(%arg0: i32) -> (i32, i32) {
    %c0_i32 = arith.constant 0 : i32
    %c0_i32_0 = arith.constant 0 : i32
    %c0_i32_1 = arith.constant 0 : i32
    return %c0_i32, %c0_i32_0 : i32, i32
  }
  func.func @transform_4(%arg0: i32) -> (i32, i32) {
    %c0_i32 = arith.constant 0 : i32
    %c0_i32_0 = arith.constant 0 : i32
    %c0_i32_1 = arith.constant 0 : i32
    return %c0_i32, %c0_i32_0 : i32, i32
  }
  func.func @transform_5(%arg0: i32) -> (i32, i32) {
    %c0_i32 = arith.constant 0 : i32
    %c0_i32_0 = arith.constant 0 : i32
    %c0_i32_1 = arith.constant 0 : i32
    return %c0_i32, %c0_i32_0 : i32, i32
  }
  func.func @transform_6(%arg0: i32) -> (i32, i32, i32) {
    %c0_i32 = arith.constant 0 : i32
    %c0_i32_0 = arith.constant 0 : i32
    %c0_i32_1 = arith.constant 0 : i32
    return %arg0, %c0_i32, %c0_i32_0 : i32, i32, i32
  }
}

</mosaic_0001>

<llo_original>
// kernel: resblk_forward.1
$region0: #{resblk_forward.1}
  #allocation0 [shape = 'u32[]', space=smem, size = 0x4, offset = 0x4, fixed_abs, tag = 'smem constant byte address 0x4 - core index']
  #allocation1 [shape = 'u32[144,128]{1,0:T(1,128)}', space=vmem, size = 0x12000, scoped, tag = 'internal scratch']
  %s0 = inlined_call_operand.vmem [shape: f32[2,4,256], index: 0, kind: input, shape index: {}]
  %s1 = inlined_call_operand.vmem [shape: f32[9,256], index: 1, kind: input, shape index: {}]
  %s2 = inlined_call_operand.vmem [shape: f32[4,36], index: 2, kind: input, shape index: {}]
  %s3 = inlined_call_operand.vmem [shape: f32[4,1], index: 3, kind: input, shape index: {}]
  %s4 = inlined_call_operand.vmem [shape: f32[4,36], index: 4, kind: input, shape index: {}]
  %s5 = inlined_call_operand.vmem [shape: f32[4,1], index: 5, kind: input, shape index: {}]
  %s6 = inlined_call_operand.vmem [shape: f32[2,4,256], index: 6, kind: output, shape index: {}]
  %s7 = sld [smem:[#allocation0]]
  $region57: #{resblk_forward.1} parent=0
    _
  %s9 = ssub.s32 1, %s7
  %s10 = scalar_select 0, %s9, %s7
  loop: start=0, step=1, limit=4
  $region2: #{resblk_forward.1} parent=0 // loop_pre_header
    _
  $region3: #{resblk_forward.1} parent=0 // loop_header
    %s12 = sphi 0, %s16
    %p13 = scmp.ge.s32.totalorder %s12, 4
    %s22 = sphi 0, %s24
    %s25 = sphi 0, %s22
    %s26 = sphi 0, %s25
    %s42 = sphi 0, %s26
    %s46 = sphi 0, %s46
    %s48 = sphi 0, %s46
    %s49 = sphi 0, %s48
    %s63 = sphi 0, %s49
    %s67 = sphi 0, %s67
    %s69 = sphi 0, %s67
    %s70 = sphi 0, %s69
    %s84 = sphi 0, %s70
    %s88 = sphi 0, %s88
    %s90 = sphi 0, %s88
    %s91 = sphi 0, %s90
    %s105 = sphi 0, %s91
    %s109 = sphi 0, %s109
    %s111 = sphi 0, %s109
    %s112 = sphi 0, %s111
    %s126 = sphi 0, %s112
    %s130 = sphi 0, %s130
    %s132 = sphi 0, %s130
    %s133 = sphi 0, %s132
    %s147 = sphi 0, %s133
    %s153 = sphi 0, %s155
    %s156 = sphi 0, %s153
    %s157 = sphi 0, %s156
    %s173 = sphi 0, %s157
  $region4: #{resblk_forward.1} parent=0 // loop_header_branch
    %15 = sbr.rel (%p13) target = $region8
  $region5: #{resblk_forward.1} parent=0 // loop_body
    %s17 = ssub.s32 %s12, 1
    %s18 = ssub.s32 %s12, 2
    %s19 = sadd.s32 %s12, 1
    %s20 = ssub.s32 %s12, %s19
    %p21 = scmp.eq.s32.totalorder %s20, 0
    %s23 = sadd.s32 %s22, 1
    %s24 = scalar_select %p21, %s22, %s23
    %p27 = pneg %p21
    %p28 = scmp.eq.s32.totalorder %s12, 1
    %p29 = por %p27, %p28
    %p30 = scmp.ne.s32.totalorder %s22, %s25
    %p31 = scmp.eq.s32.totalorder %s12, 0
    %p32 = por %p30, %p31
    %p33 = scmp.ne.s32.totalorder %s22, %s25
    %p34 = scmp.eq.s32.totalorder %s17, 1
    %p35 = por %p33, %p34
    %p36 = scmp.ne.s32.totalorder %s25, %s26
    %p37 = scmp.eq.s32.totalorder %s17, 0
    %p38 = por %p36, %p37
    %p39 = scmp.ne.s32.totalorder %s25, %s26
    %p40 = scmp.eq.s32.totalorder %s18, 1
    %p41 = por %p39, %p40
    %p43 = scmp.ne.s32.totalorder %s26, %s42
    %p44 = scmp.eq.s32.totalorder %s18, 0
    %p45 = por %p43, %p44
    %s47 = sadd.s32 %s46, 1
    %p50 = scmp.eq.s32.totalorder %s12, 1
    %p51 = scmp.ne.s32.totalorder %s46, %s48
    %p52 = scmp.eq.s32.totalorder %s12, 0
    %p53 = por %p51, %p52
    %p54 = scmp.ne.s32.totalorder %s46, %s48
    %p55 = scmp.eq.s32.totalorder %s17, 1
    %p56 = por %p54, %p55
    %p57 = scmp.ne.s32.totalorder %s48, %s49
    %p58 = scmp.eq.s32.totalorder %s17, 0
    %p59 = por %p57, %p58
    %p60 = scmp.ne.s32.totalorder %s48, %s49
    %p61 = scmp.eq.s32.totalorder %s18, 1
    %p62 = por %p60, %p61
    %p64 = scmp.ne.s32.totalorder %s49, %s63
    %p65 = scmp.eq.s32.totalorder %s18, 0
    %p66 = por %p64, %p65
    %s68 = sadd.s32 %s67, 1
    %p71 = scmp.eq.s32.totalorder %s12, 1
    %p72 = scmp.ne.s32.totalorder %s67, %s69
    %p73 = scmp.eq.s32.totalorder %s12, 0
    %p74 = por %p72, %p73
    %p75 = scmp.ne.s32.totalorder %s67, %s69
    %p76 = scmp.eq.s32.totalorder %s17, 1
    %p77 = por %p75, %p76
    %p78 = scmp.ne.s32.totalorder %s69, %s70
    %p79 = scmp.eq.s32.totalorder %s17, 0
    %p80 = por %p78, %p79
    %p81 = scmp.ne.s32.totalorder %s69, %s70
    %p82 = scmp.eq.s32.totalorder %s18, 1
    %p83 = por %p81, %p82
    %p85 = scmp.ne.s32.totalorder %s70, %s84
    %p86 = scmp.eq.s32.totalorder %s18, 0
    %p87 = por %p85, %p86
    %s89 = sadd.s32 %s88, 1
    %p92 = scmp.eq.s32.totalorder %s12, 1
    %p93 = scmp.ne.s32.totalorder %s88, %s90
    %p94 = scmp.eq.s32.totalorder %s12, 0
    %p95 = por %p93, %p94
    %p96 = scmp.ne.s32.totalorder %s88, %s90
    %p97 = scmp.eq.s32.totalorder %s17, 1
    %p98 = por %p96, %p97
    %p99 = scmp.ne.s32.totalorder %s90, %s91
    %p100 = scmp.eq.s32.totalorder %s17, 0
    %p101 = por %p99, %p100
    %p102 = scmp.ne.s32.totalorder %s90, %s91
    %p103 = scmp.eq.s32.totalorder %s18, 1
    %p104 = por %p102, %p103
    %p106 = scmp.ne.s32.totalorder %s91, %s105
    %p107 = scmp.eq.s32.totalorder %s18, 0
    %p108 = por %p106, %p107
    %s110 = sadd.s32 %s109, 1
    %p113 = scmp.eq.s32.totalorder %s12, 1
    %p114 = scmp.ne.s32.totalorder %s109, %s111
    %p115 = scmp.eq.s32.totalorder %s12, 0
    %p116 = por %p114, %p115
    %p117 = scmp.ne.s32.totalorder %s109, %s111
    %p118 = scmp.eq.s32.totalorder %s17, 1
    %p119 = por %p117, %p118
    %p120 = scmp.ne.s32.totalorder %s111, %s112
    %p121 = scmp.eq.s32.totalorder %s17, 0
    %p122 = por %p120, %p121
    %p123 = scmp.ne.s32.totalorder %s111, %s112
    %p124 = scmp.eq.s32.totalorder %s18, 1
    %p125 = por %p123, %p124
    %p127 = scmp.ne.s32.totalorder %s112, %s126
    %p128 = scmp.eq.s32.totalorder %s18, 0
    %p129 = por %p127, %p128
    %s131 = sadd.s32 %s130, 1
    %p134 = scmp.eq.s32.totalorder %s12, 1
    %p135 = scmp.ne.s32.totalorder %s130, %s132
    %p136 = scmp.eq.s32.totalorder %s12, 0
    %p137 = por %p135, %p136
    %p138 = scmp.ne.s32.totalorder %s130, %s132
    %p139 = scmp.eq.s32.totalorder %s17, 1
    %p140 = por %p138, %p139
    %p141 = scmp.ne.s32.totalorder %s132, %s133
    %p142 = scmp.eq.s32.totalorder %s17, 0
    %p143 = por %p141, %p142
    %p144 = scmp.ne.s32.totalorder %s132, %s133
    %p145 = scmp.eq.s32.totalorder %s18, 1
    %p146 = por %p144, %p145
    %p148 = scmp.ne.s32.totalorder %s133, %s147
    %p149 = scmp.eq.s32.totalorder %s18, 0
    %p150 = por %p148, %p149
    %s151 = ssub.s32 %s12, %s19
    %p152 = scmp.eq.s32.totalorder %s151, 0
    %s154 = sadd.s32 %s153, 1
    %s155 = scalar_select %p152, %s153, %s154
    %p158 = pneg %p152
    %p159 = scmp.eq.s32.totalorder %s12, 1
    %p160 = por %p158, %p159
    %p161 = scmp.ne.s32.totalorder %s153, %s156
    %p162 = scmp.eq.s32.totalorder %s12, 0
    %p163 = por %p161, %p162
    %p164 = scmp.ne.s32.totalorder %s153, %s156
    %p165 = scmp.eq.s32.totalorder %s17, 1
    %p166 = por %p164, %p165
    %p167 = scmp.ne.s32.totalorder %s156, %s157
    %p168 = scmp.eq.s32.totalorder %s17, 0
    %p169 = por %p167, %p168
    %p170 = scmp.ne.s32.totalorder %s156, %s157
    %p171 = scmp.eq.s32.totalorder %s18, 1
    %p172 = por %p170, %p171
    %p174 = scmp.ne.s32.totalorder %s157, %s173
    %p175 = scmp.eq.s32.totalorder %s18, 0
    %p176 = por %p174, %p175
    %p177 = scmp.le.s32.totalorder 1, %s12
    %p178 = scmp.lt.s32.totalorder %s12, 3
    %p179 = pnand %p177, %p178
    %p180 = pneg %p179
    // Predicated region
    $region9: #{resblk_forward.1} parent=5 // pred_check
      _
    $region10: #{resblk_forward.1} parent=5 // pred_check_branch
      %182 = sbr.rel (%p179) target = $region12
    $region11: #{resblk_forward.1} parent=5 // pred_region
      %s183 = ssub.s32 %s12, 1
      // Predicated region
      $region13: #{resblk_forward.1} parent=11 // pred_check
        %p184 = pneg %p59
      $region14: #{resblk_forward.1} parent=11 // pred_check_branch
        %186 = sbr.rel (%p184) target = $region16
      $region15: #{resblk_forward.1} parent=11 // pred_region
        _
      $region16: #{resblk_forward.1} parent=11 // pred_fallthru
        _
      // Predicated region
      $region17: #{resblk_forward.1} parent=11 // pred_check
        %p187 = pneg %p80
      $region18: #{resblk_forward.1} parent=11 // pred_check_branch
        %189 = sbr.rel (%p187) target = $region20
      $region19: #{resblk_forward.1} parent=11 // pred_region
        _
      $region20: #{resblk_forward.1} parent=11 // pred_fallthru
        _
      // Predicated region
      $region21: #{resblk_forward.1} parent=11 // pred_check
        %p190 = pneg %p101
      $region22: #{resblk_forward.1} parent=11 // pred_check_branch
        %192 = sbr.rel (%p190) target = $region24
      $region23: #{resblk_forward.1} parent=11 // pred_region
        _
      $region24: #{resblk_forward.1} parent=11 // pred_fallthru
        _
      // Predicated region
      $region25: #{resblk_forward.1} parent=11 // pred_check
        %p193 = pneg %p122
      $region26: #{resblk_forward.1} parent=11 // pred_check_branch
        %195 = sbr.rel (%p193) target = $region28
      $region27: #{resblk_forward.1} parent=11 // pred_region
        _
      $region28: #{resblk_forward.1} parent=11 // pred_fallthru
        _
      // Predicated region
      $region29: #{resblk_forward.1} parent=11 // pred_check
        %p196 = pneg %p143
      $region30: #{resblk_forward.1} parent=11 // pred_check_branch
        %198 = sbr.rel (%p196) target = $region32
      $region31: #{resblk_forward.1} parent=11 // pred_region
        _
      $region32: #{resblk_forward.1} parent=11 // pred_fallthru
        _
    $region12: #{resblk_forward.1} parent=5 // pred_fallthru
      _
    %p199 = scmp.lt.s32.totalorder %s12, 2
    // Predicated region
    $region33: #{resblk_forward.1} parent=5 // pred_check
      %p200 = pneg %p199
    $region34: #{resblk_forward.1} parent=5 // pred_check_branch
      %202 = sbr.rel (%p200) target = $region36
    $region35: #{resblk_forward.1} parent=5 // pred_region
      // Predicated region
      $region37: #{resblk_forward.1} parent=35 // pred_check
        %p203 = pneg %p32
      $region38: #{resblk_forward.1} parent=35 // pred_check_branch
        %205 = sbr.rel (%p203) target = $region40
      $region39: #{resblk_forward.1} parent=35 // pred_region
        %p206 = scmp.lt.s32.totalorder %s12, 1
        %s207 = scalar_select %p206, %s12, 1
        %s208 = smul.addr %s207, 2
        %s209 = smul.addr %s208, 4
        %s210 = scalar_lea.vmem %s0, %s209
      $region40: #{resblk_forward.1} parent=35 // pred_fallthru
        _
    $region36: #{resblk_forward.1} parent=5 // pred_fallthru
      _
    %p211 = scmp.le.s32.totalorder 1, %s12
    %p212 = scmp.lt.s32.totalorder %s12, 3
    %p213 = pnand %p211, %p212
    %p214 = pneg %p213
    // Predicated region
    $region41: #{resblk_forward.1} parent=5 // pred_check
      _
    $region42: #{resblk_forward.1} parent=5 // pred_check_branch
      %216 = sbr.rel (%p213) target = $region44
    $region43: #{resblk_forward.1} parent=5 // pred_region
      %s217 = ssub.s32 %s12, 1
      %p218 = scmp.lt.s32.totalorder %s17, 1
      %s219 = scalar_select %p218, %s17, 1
      %s220 = smul.addr %s219, 2
      %s221 = smul.addr %s220, 4
      %s222 = scalar_lea.vmem %s0, %s221
      %p223 = pneg %p38
      %p224 = pneg %p35
      %p225 = pneg %p59
      %p226 = pneg %p56
      %p227 = pneg %p80
      %p228 = pneg %p77
      %p229 = pneg %p101
      %p230 = pneg %p98
      %p231 = pneg %p122
      %p232 = pneg %p119
      %p233 = pneg %p143
      %p234 = pneg %p140
      %p235 = pneg %p169
      %p236 = pneg %p166
      %p237 = scmp.lt.s32.totalorder %s17, 1
      %s238 = scalar_select %p237, %s17, 1
      %s239 = smul.addr %s238, 2
      %s240 = smul.addr %s239, 4
      %s241 = scalar_lea.vmem %s6, %s240
      %p242 = scmp.lt.s32.totalorder %s17, 1
      %s243 = scalar_select %p242, %s17, 1
      %s244 = smul.addr %s243, 2
      %s245 = smul.addr %s244, 4
      %s246 = scalar_lea.vmem %s0, %s245
      %p247 = scmp.lt.s32.totalorder %s17, 1
      %s248 = scalar_select %p247, %s17, 1
      %s249 = smul.addr %s248, 2
      %s250 = smul.addr %s249, 4
      %s251 = scalar_lea.vmem %s6, %s250
      %v252 = vld [vmem:[%s246] sm:$0xff]
      %v253 = vld [vmem:[%s1] sm:$0xff]
      %v254 = vld [vmem:[%s1 + $0x8] sm:$0xff]
      %v255 = vld [vmem:[%s1 + $0x10] sm:$0x1]
      %v256 = vld [vmem:[%s1 + $0x18] sm:$0x1]
      %v258 = vcombine.high %v252, %v252
      %260 = vrot.lane.b32.xlu0 %v252, 17
      %v261 = vpop.permute.xlu0 %260
      %262 = vrot.lane.b32.xlu0 %v258, 17
      %v263 = vpop.permute.xlu0 %262
      %v264 = vlaneseq
      %v265 = vand.u32 %v264, 127
      %vm266 = vcmp.lt.s32.totalorder %v265, 17
      %v267 = vsel %vm266, %v261, %v263
      %v268 = vsel %vm266, %v263, %v261
      %v269 = vlaneseq
      %v270 = vshrl.u32 %v269, 7
      %v271 = vsub.s32 0, %v270
      %v272 = vrot.slane %v253, %v271
      %v273 = vlaneseq
      %v274 = vshrl.u32 %v273, 7
      %v275 = vsub.s32 0, %v274
      %v276 = vrot.slane %v254, %v275
      %v277 = vmul.f32 %v268, %v272
      %v278 = vmul.f32 %v267, %v276
      %279 = vrot.lane.b32.xlu0 %v252, 16
      %v280 = vpop.permute.xlu0 %279
      %281 = vrot.lane.b32.xlu0 %v258, 16
      %v282 = vpop.permute.xlu0 %281
      %vm283 = vcmp.lt.s32.totalorder %v265, 16
      %v284 = vsel %vm283, %v280, %v282
      %v285 = vsel %vm283, %v282, %v280
      %v286 = vlaneseq
      %v287 = vshrl.u32 %v286, 7
      %v288 = vsub.s32 1, %v287
      %v289 = vrot.slane %v253, %v288
      %v290 = vlaneseq
      %v291 = vshrl.u32 %v290, 7
      %v292 = vsub.s32 1, %v291
      %v293 = vrot.slane %v254, %v292
      %v294 = vmul.f32 %v285, %v289
      %v295 = vmul.f32 %v284, %v293
      %296 = vrot.lane.b32.xlu0 %v252, 15
      %v297 = vpop.permute.xlu0 %296
      %298 = vrot.lane.b32.xlu0 %v258, 15
      %v299 = vpop.permute.xlu0 %298
      %vm300 = vcmp.lt.s32.totalorder %v265, 15
      %v301 = vsel %vm300, %v297, %v299
      %v302 = vsel %vm300, %v299, %v297
      %v303 = vlaneseq
      %v304 = vshrl.u32 %v303, 7
      %v305 = vsub.s32 2, %v304
      %v306 = vrot.slane %v253, %v305
      %v307 = vlaneseq
      %v308 = vshrl.u32 %v307, 7
      %v309 = vsub.s32 2, %v308
      %v310 = vrot.slane %v254, %v309
      %v311 = vmul.f32 %v302, %v306
      %v312 = vmul.f32 %v301, %v310
      %313 = vrot.lane.b32.xlu0 %v252, 1
      %v314 = vpop.permute.xlu0 %313
      %315 = vrot.lane.b32.xlu0 %v258, 1
      %v316 = vpop.permute.xlu0 %315
      %vm317 = vcmp.lt.s32.totalorder %v265, 1
      %v318 = vsel %vm317, %v314, %v316
      %v319 = vsel %vm317, %v316, %v314
      %v320 = vlaneseq
      %v321 = vshrl.u32 %v320, 7
      %v322 = vsub.s32 3, %v321
      %v323 = vrot.slane %v253, %v322
      %v324 = vlaneseq
      %v325 = vshrl.u32 %v324, 7
      %v326 = vsub.s32 3, %v325
      %v327 = vrot.slane %v254, %v326
      %v328 = vmul.f32 %v319, %v323
      %v329 = vmul.f32 %v318, %v327
      %330 = vrot.lane.b32.xlu0 %v252, 127
      %v331 = vpop.permute.xlu0 %330
      %332 = vrot.lane.b32.xlu0 %v258, 127
      %v333 = vpop.permute.xlu0 %332
      %vm334 = vcmp.lt.s32.totalorder %v265, 127
      %v335 = vsel %vm334, %v331, %v333
      %v336 = vsel %vm334, %v333, %v331
      %v337 = vlaneseq
      %v338 = vshrl.u32 %v337, 7
      %v339 = vsub.s32 5, %v338
      %v340 = vrot.slane %v253, %v339
      %v341 = vlaneseq
      %v342 = vshrl.u32 %v341, 7
      %v343 = vsub.s32 5, %v342
      %v344 = vrot.slane %v254, %v343
      %v345 = vmul.f32 %v335, %v340
      %v346 = vmul.f32 %v336, %v344
      %347 = vrot.lane.b32.xlu0 %v252, 113
      %v348 = vpop.permute.xlu0 %347
      %349 = vrot.lane.b32.xlu0 %v258, 113
      %v350 = vpop.permute.xlu0 %349
      %vm351 = vcmp.lt.s32.totalorder %v265, 113
      %v352 = vsel %vm351, %v348, %v350
      %v353 = vsel %vm351, %v350, %v348
      %v354 = vlaneseq
      %v355 = vshrl.u32 %v354, 7
      %v356 = vsub.s32 6, %v355
      %v357 = vrot.slane %v253, %v356
      %v358 = vlaneseq
      %v359 = vshrl.u32 %v358, 7
      %v360 = vsub.s32 6, %v359
      %v361 = vrot.slane %v254, %v360
      %v362 = vmul.f32 %v352, %v357
      %v363 = vmul.f32 %v353, %v361
      %364 = vrot.lane.b32.xlu0 %v252, 112
      %v365 = vpop.permute.xlu0 %364
      %366 = vrot.lane.b32.xlu0 %v258, 112
      %v367 = vpop.permute.xlu0 %366
      %vm368 = vcmp.lt.s32.totalorder %v265, 112
      %v369 = vsel %vm368, %v365, %v367
      %v370 = vsel %vm368, %v367, %v365
      %v371 = vlaneseq
      %v372 = vshrl.u32 %v371, 7
      %v373 = vsub.s32 7, %v372
      %v374 = vrot.slane %v253, %v373
      %v375 = vlaneseq
      %v376 = vshrl.u32 %v375, 7
      %v377 = vsub.s32 7, %v376
      %v378 = vrot.slane %v254, %v377
      %v379 = vmul.f32 %v369, %v374
      %v380 = vmul.f32 %v370, %v378
      %381 = vrot.lane.b32.xlu0 %v252, 111
      %v382 = vpop.permute.xlu0 %381
      %383 = vrot.lane.b32.xlu0 %v258, 111
      %v384 = vpop.permute.xlu0 %383
      %vm385 = vcmp.lt.s32.totalorder %v265, 111
      %v386 = vsel %vm385, %v382, %v384
      %v387 = vsel %vm385, %v384, %v382
      %v388 = vlaneseq
      %v389 = vshrl.u32 %v388, 7
      %v390 = vsub.s32 0, %v389
      %v391 = vrot.slane %v255, %v390
      %v392 = vlaneseq
      %v393 = vshrl.u32 %v392, 7
      %v394 = vsub.s32 0, %v393
      %v395 = vrot.slane %v256, %v394
      %v396 = vmul.f32 %v386, %v391
      %v397 = vmul.f32 %v387, %v395
      %v400 = vrot.slane %v294, 4
      %v401 = vrot.slane %v295, 4
      %v406 = vrot.slane %v328, 4
      %v407 = vrot.slane %v329, 4
      %v412 = vrot.slane %v345, 4
      %v413 = vrot.slane %v346, 4
      %v418 = vrot.slane %v379, 4
      %v419 = vrot.slane %v380, 4
      %vm422 = vcmask 1043456
      %v423 = vsel %vm422, %v277, %v400
      %v424 = vsel %vm422, %v278, %v401
      %v425 = vsel %vm422, %v311, %v406
      %v426 = vsel %vm422, %v312, %v407
      %v427 = vsel %vm422, %v252, %v412
      %v428 = vsel %vm422, %v258, %v413
      %v429 = vsel %vm422, %v362, %v418
      %v430 = vsel %vm422, %v363, %v419
      %v431 = vld [vmem:[%s2] sm:$0xf]
      %v432 = vld [vmem:[%s3] sm:$0xf]
      %434 = vset.pattern.permute.xlu0 0
      %435 = vperm.xlu0 %434, %v432
      %v436 = vpop.permute.xlu0 %435
      %vm438 = vcmask 293888
      %v440 = vsel %vm438, %v431, 0
      %v443 = vsel %vm422, %v396, 0
      %v446 = vsel %vm422, %v397, 0
      %448 = vmatprep.subr.mxu0 %v424
      %449 = vmatpush1.msra.mxu0 %v423
      %450 = vmatprep.subr.mxu0 %v426
      %451 = vmatpush1.msra.mxu0 %v425
      %452 = vmatprep.subr.mxu0 %v428
      %453 = vmatpush1.msra.mxu0 %v427
      %454 = vmatprep.subr.mxu0 %v430
      %455 = vmatpush1.msra.mxu0 %v429
      %456 = vmatprep.subr.mxu0 %v446
      %457 = vmatpush1.msra.mxu0 %v443
      %458 = vmatprep.subr.mxu0 0.0
      %459 = vmatpush1.msra.mxu0 0.0
      %460 = vmatprep.subr.mxu0 0.0
      %461 = vmatpush1.msra.mxu0 0.0
      %462 = vmatprep.subr.mxu0 0.0
      %463 = vmatpush1.msra.mxu0 0.0
      %464 = vmatprep.subr.mxu0 0.0
      %465 = vmatpush1.msra.mxu0 0.0
      %466 = vmatprep.subr.mxu0 0.0
      %467 = vmatpush1.msra.mxu0 0.0
      %468 = vmatprep.subr.mxu0 0.0
      %469 = vmatpush1.msra.mxu0 0.0
      %470 = vmatprep.subr.mxu0 0.0
      %471 = vmatpush1.msra.mxu0 0.0
      %472 = vmatprep.subr.mxu0 0.0
      %473 = vmatpush1.msra.mxu0 0.0
      %474 = vmatprep.subr.mxu0 0.0
      %475 = vmatpush1.msra.mxu0 0.0
      %476 = vmatprep.subr.mxu0 0.0
      %477 = vmatpush1.msra.mxu0 0.0
      %478 = vmatprep.subr.mxu0 0.0
      %479 = vmatpush1.msra.mxu0 0.0
      %480 = vmatprep.subr.mxu0 0.0
      %481 = vmatpush1.msra.mxu0 0.0
      %482 = vmatprep.subr.mxu0 0.0
      %483 = vmatpush1.msra.mxu0 0.0
      %484 = vmatprep.subr.mxu0 0.0
      %485 = vmatpush1.msra.mxu0 0.0
      %486 = vmatprep.subr.mxu0 0.0
      %487 = vmatpush1.msra.mxu0 0.0
      %488 = vmatprep.subr.mxu0 0.0
      %489 = vmatpush1.msra.mxu0 0.0
      %490 = vmatprep.subr.mxu0 0.0
      %491 = vmatpush1.msra.mxu0 0.0
      %492 = vmatprep.subr.mxu0 0.0
      %493 = vmatpush1.msra.mxu0 0.0
      %494 = vmatprep.subr.mxu0 0.0
      %495 = vmatpush1.msra.mxu0 0.0
      %496 = vmatprep.subr.mxu0 0.0
      %497 = vmatpush1.msra.mxu0 0.0
      %498 = vmatprep.subr.mxu0 0.0
      %499 = vmatpush1.msra.mxu0 0.0
      %500 = vmatprep.subr.mxu0 0.0
      %501 = vmatpush1.msra.mxu0 0.0
      %502 = vmatprep.subr.mxu0 0.0
      %503 = vmatpush1.msra.mxu0 0.0
      %504 = vmatprep.subr.mxu0 0.0
      %505 = vmatpush1.msra.mxu0 0.0
      %506 = vmatprep.subr.mxu0 0.0
      %507 = vmatpush1.msra.mxu0 0.0
      %508 = vmatprep.subr.mxu0 0.0
      %509 = vmatpush1.msra.mxu0 0.0
      %510 = vmatprep.subr.mxu0 0.0
      %511 = vmatpush1.msra.mxu0 0.0
      %512 = vmatprep.mubr.f32.mxu0 0.0
      %513 = vmatmul.mubr.f32.gmra.mrb[0].mxu0 %v440
      %v514 = vpop.f32.mrb[0].mxu0
      %v515 = vadd.f32 %v436, %v514
      %v516 = vpop.f32.mrb[0].mxu0
      %v517 = vadd.f32 %v436, %v516
      %518 = vdwg.mxu0
      %v519 = vmul.f32 %v515, 0.01
      %v520 = vmul.f32 %v517, 0.01
      %v521 = vmax.f32 %v515, %v519
      %v522 = vmax.f32 %v517, %v520
      %523 = vrot.lane.b32.xlu0 %v521, 17
      %v524 = vpop.permute.xlu0 %523
      %525 = vrot.lane.b32.xlu0 %v522, 17
      %v526 = vpop.permute.xlu0 %525
      %v527 = vsel %vm266, %v524, %v526
      %v528 = vsel %vm266, %v526, %v524
      %v529 = vmul.f32 %v528, %v272
      %v530 = vmul.f32 %v527, %v276
      %531 = vrot.lane.b32.xlu0 %v521, 16
      %v532 = vpop.permute.xlu0 %531
      %533 = vrot.lane.b32.xlu0 %v522, 16
      %v534 = vpop.permute.xlu0 %533
      %v535 = vsel %vm283, %v532, %v534
      %v536 = vsel %vm283, %v534, %v532
      %v537 = vmul.f32 %v536, %v289
      %v538 = vmul.f32 %v535, %v293
      %539 = vrot.lane.b32.xlu0 %v521, 15
      %v540 = vpop.permute.xlu0 %539
      %541 = vrot.lane.b32.xlu0 %v522, 15
      %v542 = vpop.permute.xlu0 %541
      %v543 = vsel %vm300, %v540, %v542
      %v544 = vsel %vm300, %v542, %v540
      %v545 = vmul.f32 %v544, %v306
      %v546 = vmul.f32 %v543, %v310
      %547 = vrot.lane.b32.xlu0 %v521, 1
      %v548 = vpop.permute.xlu0 %547
      %549 = vrot.lane.b32.xlu0 %v522, 1
      %v550 = vpop.permute.xlu0 %549
      %v551 = vsel %vm317, %v548, %v550
      %v552 = vsel %vm317, %v550, %v548
      %v553 = vmul.f32 %v552, %v323
      %v554 = vmul.f32 %v551, %v327
      %555 = vrot.lane.b32.xlu0 %v521, 127
      %v556 = vpop.permute.xlu0 %555
      %557 = vrot.lane.b32.xlu0 %v522, 127
      %v558 = vpop.permute.xlu0 %557
      %v559 = vsel %vm334, %v556, %v558
      %v560 = vsel %vm334, %v558, %v556
      %v561 = vmul.f32 %v559, %v340
      %v562 = vmul.f32 %v560, %v344
      %563 = vrot.lane.b32.xlu0 %v521, 113
      %v564 = vpop.permute.xlu0 %563
      %565 = vrot.lane.b32.xlu0 %v522, 113
      %v566 = vpop.permute.xlu0 %565
      %v567 = vsel %vm351, %v564, %v566
      %v568 = vsel %vm351, %v566, %v564
      %v569 = vmul.f32 %v567, %v357
      %v570 = vmul.f32 %v568, %v361
      %571 = vrot.lane.b32.xlu0 %v521, 112
      %v572 = vpop.permute.xlu0 %571
      %573 = vrot.lane.b32.xlu0 %v522, 112
      %v574 = vpop.permute.xlu0 %573
      %v575 = vsel %vm368, %v572, %v574
      %v576 = vsel %vm368, %v574, %v572
      %v577 = vmul.f32 %v575, %v374
      %v578 = vmul.f32 %v576, %v378
      %579 = vrot.lane.b32.xlu0 %v521, 111
      %v580 = vpop.permute.xlu0 %579
      %581 = vrot.lane.b32.xlu0 %v522, 111
      %v582 = vpop.permute.xlu0 %581
      %v583 = vsel %vm385, %v580, %v582
      %v584 = vsel %vm385, %v582, %v580
      %v585 = vmul.f32 %v583, %v391
      %v586 = vmul.f32 %v584, %v395
      %v589 = vrot.slane %v537, 4
      %v590 = vrot.slane %v538, 4
      %v595 = vrot.slane %v553, 4
      %v596 = vrot.slane %v554, 4
      %v601 = vrot.slane %v561, 4
      %v602 = vrot.slane %v562, 4
      %v607 = vrot.slane %v577, 4
      %v608 = vrot.slane %v578, 4
      %v611 = vsel %vm422, %v529, %v589
      %v612 = vsel %vm422, %v530, %v590
      %v613 = vsel %vm422, %v545, %v595
      %v614 = vsel %vm422, %v546, %v596
      %v615 = vsel %vm422, %v521, %v601
      %v616 = vsel %vm422, %v522, %v602
      %v617 = vsel %vm422, %v569, %v607
      %v618 = vsel %vm422, %v570, %v608
      %v619 = vld [vmem:[%s4] sm:$0xf]
      %v620 = vld [vmem:[%s5] sm:$0xf]
      %622 = vset.pattern.permute.xlu0 0
      %623 = vperm.xlu0 %622, %v620
      %v624 = vpop.permute.xlu0 %623
      %v627 = vsel %vm438, %v619, 0
      %v630 = vsel %vm422, %v585, 0
      %v633 = vsel %vm422, %v586, 0
      %635 = vmatprep.subr.mxu0 %v612
      %636 = vmatpush1.msra.mxu0 %v611
      %637 = vmatprep.subr.mxu0 %v614
      %638 = vmatpush1.msra.mxu0 %v613
      %639 = vmatprep.subr.mxu0 %v616
      %640 = vmatpush1.msra.mxu0 %v615
      %641 = vmatprep.subr.mxu0 %v618
      %642 = vmatpush1.msra.mxu0 %v617
      %643 = vmatprep.subr.mxu0 %v633
      %644 = vmatpush1.msra.mxu0 %v630
      %645 = vmatprep.subr.mxu0 0.0
      %646 = vmatpush1.msra.mxu0 0.0
      %647 = vmatprep.subr.mxu0 0.0
      %648 = vmatpush1.msra.mxu0 0.0
      %649 = vmatprep.subr.mxu0 0.0
      %650 = vmatpush1.msra.mxu0 0.0
      %651 = vmatprep.subr.mxu0 0.0
      %652 = vmatpush1.msra.mxu0 0.0
      %653 = vmatprep.subr.mxu0 0.0
      %654 = vmatpush1.msra.mxu0 0.0
      %655 = vmatprep.subr.mxu0 0.0
      %656 = vmatpush1.msra.mxu0 0.0
      %657 = vmatprep.subr.mxu0 0.0
      %658 = vmatpush1.msra.mxu0 0.0
      %659 = vmatprep.subr.mxu0 0.0
      %660 = vmatpush1.msra.mxu0 0.0
      %661 = vmatprep.subr.mxu0 0.0
      %662 = vmatpush1.msra.mxu0 0.0
      %663 = vmatprep.subr.mxu0 0.0
      %664 = vmatpush1.msra.mxu0 0.0
      %665 = vmatprep.subr.mxu0 0.0
      %666 = vmatpush1.msra.mxu0 0.0
      %667 = vmatprep.subr.mxu0 0.0
      %668 = vmatpush1.msra.mxu0 0.0
      %669 = vmatprep.subr.mxu0 0.0
      %670 = vmatpush1.msra.mxu0 0.0
      %671 = vmatprep.subr.mxu0 0.0
      %672 = vmatpush1.msra.mxu0 0.0
      %673 = vmatprep.subr.mxu0 0.0
      %674 = vmatpush1.msra.mxu0 0.0
      %675 = vmatprep.subr.mxu0 0.0
      %676 = vmatpush1.msra.mxu0 0.0
      %677 = vmatprep.subr.mxu0 0.0
      %678 = vmatpush1.msra.mxu0 0.0
      %679 = vmatprep.subr.mxu0 0.0
      %680 = vmatpush1.msra.mxu0 0.0
      %681 = vmatprep.subr.mxu0 0.0
      %682 = vmatpush1.msra.mxu0 0.0
      %683 = vmatprep.subr.mxu0 0.0
      %684 = vmatpush1.msra.mxu0 0.0
      %685 = vmatprep.subr.mxu0 0.0
      %686 = vmatpush1.msra.mxu0 0.0
      %687 = vmatprep.subr.mxu0 0.0
      %688 = vmatpush1.msra.mxu0 0.0
      %689 = vmatprep.subr.mxu0 0.0
      %690 = vmatpush1.msra.mxu0 0.0
      %691 = vmatprep.subr.mxu0 0.0
      %692 = vmatpush1.msra.mxu0 0.0
      %693 = vmatprep.subr.mxu0 0.0
      %694 = vmatpush1.msra.mxu0 0.0
      %695 = vmatprep.subr.mxu0 0.0
      %696 = vmatpush1.msra.mxu0 0.0
      %697 = vmatprep.subr.mxu0 0.0
      %698 = vmatpush1.msra.mxu0 0.0
      %699 = vmatprep.mubr.f32.mxu0 0.0
      %700 = vmatmul.mubr.f32.gmra.mrb[0].mxu0 %v627
      %v701 = vpop.f32.mrb[0].mxu0
      %v702 = vadd.f32 %v624, %v701
      %v703 = vpop.f32.mrb[0].mxu0
      %v704 = vadd.f32 %v624, %v703
      %705 = vdwg.mxu0
      %v706 = vadd.f32 %v702, %v252
      %v707 = vadd.f32 %v704, %v258
      %v710 = vcombine.low %v706, %v707
      %712 = vst [vmem:[%s251] sm:$0xff] %v710
      %p713 = scmp.lt.s32.totalorder %s17, 1
      %s714 = scalar_select %p713, %s17, 1
      %s715 = smul.addr %s714, 2
      %s716 = smul.addr %s715, 4
      %s717 = scalar_lea.vmem %s6, %s716
      // Predicated region
      $region45: #{resblk_forward.1} parent=43 // pred_check
        %p718 = pneg %p166
      $region46: #{resblk_forward.1} parent=43 // pred_check_branch
        %720 = sbr.rel (%p718) target = $region48
      $region47: #{resblk_forward.1} parent=43 // pred_region
        _
      $region48: #{resblk_forward.1} parent=43 // pred_fallthru
        _
    $region44: #{resblk_forward.1} parent=5 // pred_fallthru
      _
    %p721 = scmp.le.s32.totalorder 2, %s12
    // Predicated region
    $region49: #{resblk_forward.1} parent=5 // pred_check
      %p722 = pneg %p721
    $region50: #{resblk_forward.1} parent=5 // pred_check_branch
      %724 = sbr.rel (%p722) target = $region52
    $region51: #{resblk_forward.1} parent=5 // pred_region
      %s725 = ssub.s32 %s12, 2
      // Predicated region
      $region53: #{resblk_forward.1} parent=51 // pred_check
        %p726 = pneg %p172
      $region54: #{resblk_forward.1} parent=51 // pred_check_branch
        %728 = sbr.rel (%p726) target = $region56
      $region55: #{resblk_forward.1} parent=51 // pred_region
        %p729 = scmp.lt.s32.totalorder %s18, 1
        %s730 = scalar_select %p729, %s18, 1
        %s731 = smul.addr %s730, 2
        %s732 = smul.addr %s731, 4
        %s733 = scalar_lea.vmem %s6, %s732
      $region56: #{resblk_forward.1} parent=51 // pred_fallthru
        _
    $region52: #{resblk_forward.1} parent=5 // pred_fallthru
      _
  $region6: #{resblk_forward.1} parent=0 // loop_footer
    %s16 = sadd.s32 1, %s12
  $region7: #{resblk_forward.1} parent=0 // loop_footer_branch
    %11 = sbr.rel target = $region3
  $region8: #{resblk_forward.1} parent=0 // loop_exit
    _

</llo_original>
